<compile_context>
chip_gen: v5e
topology: v5e:2x2
jax: 0.10.0
libtpu: 0.0.40
codegen_flags: <defaults>
</compile_context>

<pallas_src>
import jax
import jax.numpy as jnp
from jax.experimental import pallas as pl
from jax.experimental.pallas import tpu as pltpu


def _clip_kernel(x_ref, o_ref):
    """Pure streaming clip; x_ref/o_ref are identical lane-dense blocks."""
    o_ref[...] = jnp.clip(x_ref[...], 0.0, 1.0)


def _divisors(n):
    ds = set()
    i = 1
    while i * i <= n:
        if n % i == 0:
            ds.add(i)
            ds.add(n // i)
        i += 1
    return sorted(ds)


def _pick_tiles(BC, Tc, HW, itemsize, *, target_block_bytes=4 << 20, min_steps=8):
    """Pick (sublane_block, lane_block) for the cropped streaming clip.

    * sublane block: full B*C when <= 8, else 8 (multiple of 8 -> legal).
    * lane block: a multiple of 128 that divides H*W, so the +1-frame crop
      offset is a whole number of lane blocks and there is no partial tail.
      Largest such block <= ~4 MiB per buffer; when the tensor is large
      enough (>= 8 MiB) prefer >= min_steps grid steps for v7x's two cores.
    """
    bc_blk = BC if BC <= 8 else 8
    q = HW // 128                       # caller guarantees HW % 128 == 0
    cands = [128 * d for d in _divisors(q)]
    max_lane = max(128, target_block_bytes // (bc_blk * itemsize))
    fitting = [c for c in cands if c <= max_lane] or [cands[0]]
    lane = fitting[-1]

    total_bytes = BC * Tc * HW * itemsize
    bc_tiles = pl.cdiv(BC, bc_blk)
    if total_bytes >= (8 << 20):
        # Largest fitting lane block that still yields >= min_steps grid steps.
        for c in reversed(fitting):
            lane = c
            if bc_tiles * (Tc * HW // c) >= min_steps:
                break
    return bc_blk, lane


def stage_denoise32_forward(seqn, keys=()):
    """seqn: (B, C, T, H, W).  Models Stage_denoise32(keys=[]).forward.

    Returns (clip(seqdn)[:, :, 1:-1], denoised_inter={}, predicted_noise={}).
    """
    assert not keys, "Only the default keys=[] (no Birnn stage) is modeled."
    B, C, T, H, W = seqn.shape
    assert T >= 3, "Temporal crop [1:-1] requires T >= 3."
    BC, HW, Tc = B * C, H * W, T - 2
    itemsize = jnp.dtype(seqn.dtype).itemsize

    if HW % 128 == 0:
        # Fast path: zero-copy.  Contiguous (free) reshape to (B*C, T*H*W);
        # the crop is a lane-block offset in the input index_map, so frames
        # 0 and T-1 are never read.
        x = seqn.reshape(BC, T * HW)
        bc_blk, lane = _pick_tiles(BC, Tc, HW, itemsize)
        off_blocks = HW // lane                      # +1 frame, in lane blocks
        grid = (pl.cdiv(BC, bc_blk), (Tc * HW) // lane)

        out2d = pl.pallas_call(
            _clip_kernel,
            out_shape=jax.ShapeDtypeStruct((BC, Tc * HW), seqn.dtype),
            grid_spec=pltpu.PrefetchScalarGridSpec(
                num_scalar_prefetch=0,
                grid=grid,
                in_specs=[pl.BlockSpec((bc_blk, lane),
                                       lambda i, j: (i, j + off_blocks))],
                out_specs=pl.BlockSpec((bc_blk, lane), lambda i, j: (i, j)),
            ),
            compiler_params=pltpu.CompilerParams(
                dimension_semantics=("parallel", "parallel"),
                vmem_limit_bytes=32 << 20,
            ),
            cost_estimate=pl.CostEstimate(
                flops=2 * BC * Tc * HW,              # two compares / element
                transcendentals=0,
                bytes_accessed=2 * BC * Tc * HW * itemsize,
            ),
        )(x)
        out = out2d.reshape(B, C, Tc, H, W)
    else:
        # Fallback: H*W not lane-aligned.  Crop in the wrapper (may cost one
        # extra HBM copy) and stream with 128-multiple lane tiles (masked
        # tail block) so VMEM stays bounded for large frames.
        x = seqn[:, :, 1:-1].reshape(BC * Tc, HW)
        n_rows = BC * Tc
        lane = HW if HW <= 2048 else 2048            # full dim or 128-multiple
        rows_budget = max(8, (4 << 20) // (lane * itemsize))
        r = n_rows if n_rows <= 8 else min(n_rows, max(8, (rows_budget // 8) * 8))
        grid = (pl.cdiv(n_rows, r), pl.cdiv(HW, lane))

        out2d = pl.pallas_call(
            _clip_kernel,
            out_shape=jax.ShapeDtypeStruct((n_rows, HW), seqn.dtype),
            grid_spec=pltpu.PrefetchScalarGridSpec(
                num_scalar_prefetch=0,
                grid=grid,
                in_specs=[pl.BlockSpec((r, lane), lambda i, j: (i, j))],
                out_specs=pl.BlockSpec((r, lane), lambda i, j: (i, j)),
            ),
            compiler_params=pltpu.CompilerParams(
                dimension_semantics=("parallel", "parallel"),
                vmem_limit_bytes=32 << 20,
            ),
        )(x)
        out = out2d.reshape(B, C, Tc, H, W)

    denoised_inter = {}
    predicted_noise = {}
    return out, denoised_inter, predicted_noise


def _reference_forward(seqn):
    """Pure-JAX reference of the PyTorch forward with keys=[]."""
    mean = jnp.mean(seqn, axis=(2, 3, 4), keepdims=True)
    centered = seqn - mean
    seqdn = centered + mean
    return jnp.clip(seqdn[:, :, 1:-1], 0.0, 1.0)


if __name__ == "__main__":
    # Small shapes consistent with the module: batch=2, channels=4, temporal=8,
    # 16x16 frames (H*W = 256, a multiple of 128 -> fast zero-copy path).
    B, C, T, H, W = 2, 4, 8, 16, 16
    key = jax.random.PRNGKey(0)
    # Values outside [0, 1] so the final clip is exercised.
    seqn = jax.random.uniform(key, (B, C, T, H, W), dtype=jnp.float32,
                              minval=-0.2, maxval=1.2)

    out, denoised_inter, predicted_noise = stage_denoise32_forward(seqn)
    out = jax.block_until_ready(out)

    ref = _reference_forward(seqn)
    assert out.shape == (B, C, T - 2, H, W), out.shape
    assert denoised_inter == {} and predicted_noise == {}
    assert jnp.max(jnp.abs(out - ref)) < 1e-5

    print("KERNEL_OK")
</pallas_src>

<mosaic_0001>
module attributes {stable_mosaic.version = 11 : i64} {
  func.func @_clip_kernel(%arg0: i32, %arg1: i32, %arg2: memref<8x256xf32, #tpu.memory_space<vmem>>, %arg3: memref<8x256xf32, #tpu.memory_space<vmem>>) attributes {dimension_semantics = [#tpu.dimension_semantics<parallel>, #tpu.dimension_semantics<parallel>], iteration_bounds = array<i64: 1, 6>, scalar_prefetch = 0 : i64, scratch_operands = 0 : i64, tpu.core_type = #tpu.core_type<tc>, window_params = [{transform_indices = @transform_0, window_bounds = array<i64: 8, 256>}, {transform_indices = @transform_1, window_bounds = array<i64: 8, 256>}]} {
    %c0 = arith.constant 0 : index
    %c0_0 = arith.constant 0 : index
    %0 = vector.load %arg2[%c0, %c0_0] : memref<8x256xf32, #tpu.memory_space<vmem>>, vector<8x256xf32>
    %cst = arith.constant 0.000000e+00 : f32
    %cst_1 = arith.constant 1.000000e+00 : f32
    %1 = vector.broadcast %cst : f32 to vector<8x256xf32>
    %2 = arith.maximumf %1, %0 : vector<8x256xf32>
    %3 = vector.broadcast %cst_1 : f32 to vector<8x256xf32>
    %4 = arith.minimumf %3, %2 : vector<8x256xf32>
    %c0_2 = arith.constant 0 : index
    %c0_3 = arith.constant 0 : index
    %5 = vector.load %arg3[%c0_2, %c0_3] : memref<8x256xf32, #tpu.memory_space<vmem>>, vector<8x256xf32>
    tpu.vector_store %arg3[%c0_2, %c0_3], %4 {strides = array<i32>} : memref<8x256xf32, #tpu.memory_space<vmem>>, vector<8x256xf32>,
    return
  }
  func.func @transform_0(%arg0: i32, %arg1: i32) -> (i32, i32) {
    %c1_i32 = arith.constant 1 : i32
    %0 = arith.addi %arg1, %c1_i32 : i32
    %c0_i32 = arith.constant 0 : i32
    return %arg0, %0 : i32, i32
  }
  func.func @transform_1(%arg0: i32, %arg1: i32) -> (i32, i32) {
    %c0_i32 = arith.constant 0 : i32
    return %arg0, %arg1 : i32, i32
  }
}

</mosaic_0001>

<llo_original>
// kernel: tpu_custom_call.1
$region0: #{tpu_custom_call.1}
  #allocation0 [shape = 'u32[]', space=smem, size = 0x4, offset = 0x4, fixed_abs, tag = 'smem constant byte address 0x4 - core index']
  #allocation1 [shape = 'u32[72,128]{1,0:T(1,128)}', space=vmem, size = 0x9000, scoped, tag = 'internal scratch']
  %s0 = inlined_call_operand.hbm [shape: f32[8,2048], index: 0, kind: input, shape index: {}]
  %s1 = inlined_call_operand.hbm [shape: f32[8,1536], index: 1, kind: output, shape index: {}]
  %s2 = sld [smem:[#allocation0]]
  $region41: #{tpu_custom_call.1} parent=0
    _
  %s4 = ssub.s32 1, %s2
  %s5 = scalar_select 0, %s4, %s2
  $region1: #{tpu_custom_call.1} parent=0
    #allocation2 [shape = 'u8[16384]{0}', space=vmem, size = 0x4000, scoped, tag = 'input window, operand 0']
    #allocation3 [shape = 's32[2]{0}', space=sflag, size = 0x8, scoped, tag = 'scoped memory for tpu_custom_call.1']
    #allocation4 [shape = 's32[2]{0}', space=sflag, size = 0x8, scoped, tag = 'scoped memory for tpu_custom_call.1']
    #allocation5 [shape = 'u8[16384]{0}', space=vmem, size = 0x4000, scoped, tag = 'output window, operand 0']
    %6 = vsyncpa [#allocation3], 0
    %s7 = scalar_lea.sflag [#allocation3], 1
    %8 = vsyncpa %s7, 0
    %9 = vsyncpa [#allocation4], 0
    %s10 = scalar_lea.sflag [#allocation4], 1
    %11 = vsyncpa %s10, 0
    loop: start=0, step=1, limit=8
    $region2: #{tpu_custom_call.1} parent=1 // loop_pre_header
      _
    $region3: #{tpu_custom_call.1} parent=1 // loop_header
      %s13 = sphi 0, %s17
      %p14 = scmp.ge.s32.totalorder %s13, 8
      %s20 = sphi 0, %s32
      %s21 = sphi 0, %s28
      %s22 = sphi 0, %s20
      %s23 = sphi 0, %s21
      %s24 = sphi 0, %s22
      %s25 = sphi 0, %s23
      %s39 = sphi 0, %s41
      %s42 = sphi 0, %s39
      %s43 = sphi 0, %s42
      %s59 = sphi 0, %s43
      %s67 = sphi 0, %s69
      %s70 = sphi 0, %s67
      %s71 = sphi 0, %s70
      %s87 = sphi 0, %s71
    $region4: #{tpu_custom_call.1} parent=1 // loop_header_branch
      %16 = sbr.rel (%p14) target = $region8
    $region5: #{tpu_custom_call.1} parent=1 // loop_body
      %s18 = ssub.s32 %s13, 1
      %s19 = ssub.s32 %s13, 2
      %s26 = sadd.s32 1, %s21
      %p27 = scmp.ge.s32.totalorder %s26, 6
      %s28 = scalar_select %p27, 0, %s26
      %s29 = sadd.s32 1, %s20
      %s30 = scalar_select %p27, %s29, %s20
      %p31 = scmp.ge.s32.totalorder %s30, 1
      %s32 = scalar_select %p31, 0, %s30
      %s33 = sadd.s32 %s21, 1
      %s34 = sadd.s32 %s28, 1
      %s35 = ssub.s32 %s20, %s32
      %s36 = ssub.s32 %s33, %s34
      %s37 = sor.u32 %s35, %s36
      %p38 = scmp.eq.s32.totalorder %s37, 0
      %s40 = sadd.s32 %s39, 1
      %s41 = scalar_select %p38, %s39, %s40
      %p44 = pneg %p38
      %p45 = scmp.eq.s32.totalorder %s13, 5
      %p46 = por %p44, %p45
      %p47 = scmp.ne.s32.totalorder %s39, %s42
      %p48 = scmp.eq.s32.totalorder %s13, 0
      %p49 = por %p47, %p48
      %p50 = scmp.ne.s32.totalorder %s39, %s42
      %p51 = scmp.eq.s32.totalorder %s18, 5
      %p52 = por %p50, %p51
      %p53 = scmp.ne.s32.totalorder %s42, %s43
      %p54 = scmp.eq.s32.totalorder %s18, 0
      %p55 = por %p53, %p54
      %p56 = scmp.ne.s32.totalorder %s42, %s43
      %p57 = scmp.eq.s32.totalorder %s19, 5
      %p58 = por %p56, %p57
      %p60 = scmp.ne.s32.totalorder %s43, %s59
      %p61 = scmp.eq.s32.totalorder %s19, 0
      %p62 = por %p60, %p61
      %s63 = ssub.s32 %s20, %s32
      %s64 = ssub.s32 %s21, %s28
      %s65 = sor.u32 %s63, %s64
      %p66 = scmp.eq.s32.totalorder %s65, 0
      %s68 = sadd.s32 %s67, 1
      %s69 = scalar_select %p66, %s67, %s68
      %p72 = pneg %p66
      %p73 = scmp.eq.s32.totalorder %s13, 5
      %p74 = por %p72, %p73
      %p75 = scmp.ne.s32.totalorder %s67, %s70
      %p76 = scmp.eq.s32.totalorder %s13, 0
      %p77 = por %p75, %p76
      %p78 = scmp.ne.s32.totalorder %s67, %s70
      %p79 = scmp.eq.s32.totalorder %s18, 5
      %p80 = por %p78, %p79
      %p81 = scmp.ne.s32.totalorder %s70, %s71
      %p82 = scmp.eq.s32.totalorder %s18, 0
      %p83 = por %p81, %p82
      %p84 = scmp.ne.s32.totalorder %s70, %s71
      %p85 = scmp.eq.s32.totalorder %s19, 5
      %p86 = por %p84, %p85
      %p88 = scmp.ne.s32.totalorder %s71, %s87
      %p89 = scmp.eq.s32.totalorder %s19, 0
      %p90 = por %p88, %p89
      %p91 = scmp.le.s32.totalorder 1, %s13
      %p92 = scmp.lt.s32.totalorder %s13, 7
      %p93 = pnand %p91, %p92
      %p94 = pneg %p93
      // Predicated region
      $region9: #{tpu_custom_call.1} parent=5 // pred_check
        _
      $region10: #{tpu_custom_call.1} parent=5 // pred_check_branch
        %96 = sbr.rel (%p93) target = $region12
      $region11: #{tpu_custom_call.1} parent=5 // pred_region
        %s97 = ssub.s32 %s13, 1
      $region12: #{tpu_custom_call.1} parent=5 // pred_fallthru
        _
      %p98 = scmp.lt.s32.totalorder %s13, 6
      // Predicated region
      $region13: #{tpu_custom_call.1} parent=5 // pred_check
        %p99 = pneg %p98
      $region14: #{tpu_custom_call.1} parent=5 // pred_check_branch
        %101 = sbr.rel (%p99) target = $region16
      $region15: #{tpu_custom_call.1} parent=5 // pred_region
        // Predicated region
        $region17: #{tpu_custom_call.1} parent=15 // pred_check
          %p102 = pneg %p49
        $region18: #{tpu_custom_call.1} parent=15 // pred_check_branch
          %104 = sbr.rel (%p102) target = $region20
        $region19: #{tpu_custom_call.1} parent=15 // pred_region
          %s105 = sand.u32 %s39, 1
          %s106 = scalar_lea.sflag [#allocation3], %s105
          %s107 = sand.u32 %s39, 1
          %s108 = smul.addr %s107, 16
          %s109 = scalar_lea.vmem [#allocation2], %s108
          %s110 = sadd.s32 %s21, 1
          %s111 = smul.u32 2, %s110
          %113 = vsyncadd %s106, 0
          %s114 = smul.addr %s20, 16
          %s115 = sadd.s32 %s111, %s114
          %s116 = smul.addr %s115, 8
          %s117 = scalar_lea.hbm %s0, %s116
          %s119 = sshll.u32 %s117, 4
          %s120 = int_to_ptr.hbm [resolvable:$true] %s119
          %s121 = sshll.u32 %s109, 4
          %s122 = int_to_ptr.vmem [resolvable:$true] %s121
          %124 = dma.hbm_to_vmem [thread:$0]  %s120, 256, %s122, %s106
        $region20: #{tpu_custom_call.1} parent=15 // pred_fallthru
          _
      $region16: #{tpu_custom_call.1} parent=5 // pred_fallthru
        _
      %p125 = scmp.le.s32.totalorder 1, %s13
      %p126 = scmp.lt.s32.totalorder %s13, 7
      %p127 = pnand %p125, %p126
      %p128 = pneg %p127
      // Predicated region
      $region21: #{tpu_custom_call.1} parent=5 // pred_check
        _
      $region22: #{tpu_custom_call.1} parent=5 // pred_check_branch
        %130 = sbr.rel (%p127) target = $region24
      $region23: #{tpu_custom_call.1} parent=5 // pred_region
        %s131 = ssub.s32 %s13, 1
        %s132 = sand.u32 %s42, 1
        %s133 = scalar_lea.sflag [#allocation3], %s132
        %s134 = sand.u32 %s42, 1
        %s135 = smul.addr %s134, 16
        %s136 = scalar_lea.vmem [#allocation2], %s135
        // Predicated region
        $region25: #{tpu_custom_call.1} parent=23 // pred_check
          %p137 = pneg %p55
        $region26: #{tpu_custom_call.1} parent=23 // pred_check_branch
          %139 = sbr.rel (%p137) target = $region28
        $region27: #{tpu_custom_call.1} parent=23 // pred_region
          %141 = dma.done %s133, 256
        $region28: #{tpu_custom_call.1} parent=23 // pred_fallthru
          _
        %s142 = sand.u32 %s42, 1
        %s143 = scalar_lea.sflag [#allocation3], %s142
        %s144 = sand.u32 %s42, 1
        %s145 = smul.addr %s144, 16
        %s146 = scalar_lea.vmem [#allocation2], %s145
        %p147 = pneg %p55
        %p148 = pneg %p52
        %p149 = pneg %p83
        %p150 = pneg %p80
        %s151 = sand.u32 %s70, 1
        %s152 = scalar_lea.sflag [#allocation4], %s151
        %s153 = sand.u32 %s70, 1
        %s154 = smul.addr %s153, 16
        %s155 = scalar_lea.vmem [#allocation5], %s154
        %s156 = sadd.s32 %s23, 1
        %s157 = smul.u32 2, %s156
        %s158 = smul.u32 2, %s23
        %v159 = vld [vmem:[%s136] sm:$0xff]
        %v160 = vld [vmem:[%s136 + $0x8] sm:$0xff]
        %v161 = vmax.f32 %v159, 0.0
        %v162 = vmax.f32 %v160, 0.0
        %v163 = vmin.f32 %v161, 1.0
        %v164 = vmin.f32 %v162, 1.0
        %165 = vst [vmem:[%s155] sm:$0xff] %v163
        %166 = vst [vmem:[%s155 + $0x8] sm:$0xff] %v164
        %s167 = sand.u32 %s70, 1
        %s168 = scalar_lea.sflag [#allocation4], %s167
        %s169 = sand.u32 %s70, 1
        %s170 = smul.addr %s169, 16
        %s171 = scalar_lea.vmem [#allocation5], %s170
        // Predicated region
        $region29: #{tpu_custom_call.1} parent=23 // pred_check
          %p172 = pneg %p80
        $region30: #{tpu_custom_call.1} parent=23 // pred_check_branch
          %174 = sbr.rel (%p172) target = $region32
        $region31: #{tpu_custom_call.1} parent=23 // pred_region
          %s175 = smul.u32 2, %s23
          %177 = vsyncadd %s168, 0
          %s178 = smul.addr %s22, 12
          %s179 = sadd.s32 %s175, %s178
          %s180 = smul.addr %s179, 8
          %s181 = scalar_lea.hbm %s1, %s180
          %s183 = sshll.u32 %s171, 4
          %s184 = int_to_ptr.vmem [resolvable:$true] %s183
          %s185 = sshll.u32 %s181, 4
          %s186 = int_to_ptr.hbm [resolvable:$true] %s185
          %188 = dma.vmem_to_hbm [thread:$0]  %s184, 256, %s186, %s168
        $region32: #{tpu_custom_call.1} parent=23 // pred_fallthru
          _
      $region24: #{tpu_custom_call.1} parent=5 // pred_fallthru
        _
      %p189 = scmp.le.s32.totalorder 2, %s13
      // Predicated region
      $region33: #{tpu_custom_call.1} parent=5 // pred_check
        %p190 = pneg %p189
      $region34: #{tpu_custom_call.1} parent=5 // pred_check_branch
        %192 = sbr.rel (%p190) target = $region36
      $region35: #{tpu_custom_call.1} parent=5 // pred_region
        %s193 = ssub.s32 %s13, 2
        // Predicated region
        $region37: #{tpu_custom_call.1} parent=35 // pred_check
          %p194 = pneg %p86
        $region38: #{tpu_custom_call.1} parent=35 // pred_check_branch
          %196 = sbr.rel (%p194) target = $region40
        $region39: #{tpu_custom_call.1} parent=35 // pred_region
          %s197 = sand.u32 %s71, 1
          %s198 = scalar_lea.sflag [#allocation4], %s197
          %s199 = sand.u32 %s71, 1
          %s200 = smul.addr %s199, 16
          %s201 = scalar_lea.vmem [#allocation5], %s200
          %203 = dma.done %s198, 256
        $region40: #{tpu_custom_call.1} parent=35 // pred_fallthru
          _
      $region36: #{tpu_custom_call.1} parent=5 // pred_fallthru
        _
    $region6: #{tpu_custom_call.1} parent=1 // loop_footer
      %s17 = sadd.s32 1, %s13
    $region7: #{tpu_custom_call.1} parent=1 // loop_footer_branch
      %12 = sbr.rel target = $region3
    $region8: #{tpu_custom_call.1} parent=1 // loop_exit
      _
    %204 = vsyncpa [#allocation3], 1
    %s205 = scalar_lea.sflag [#allocation3], 1
    %206 = vsyncpa %s205, 1
    %207 = vsyncpa [#allocation4], 1
    %s208 = scalar_lea.sflag [#allocation4], 1
    %209 = vsyncpa %s208, 1

</llo_original>
